<compile_context>
chip_gen: v7x
topology: tpu7x:2x2x1
jax: 0.10.0
libtpu: 0.0.40
codegen_flags: <defaults>
</compile_context>

<pallas_src>
import math
from functools import partial

import jax
import jax.numpy as jnp
from jax import lax
from jax.experimental import pallas as pl
from jax.experimental.pallas import tpu as pltpu


def _round_up(x, m):
    return ((x + m - 1) // m) * m


# ---------------------------------------------------------------------------
# Kernel 1: fused K / V input projections over flattened (B*Sp, Dp) rows.
# (Q projection is fused into kernel 2 to avoid the qp HBM round trip.)
# ---------------------------------------------------------------------------
def _kv_proj_kernel(xk_ref, xv_ref, wk_ref, wv_ref, bk_ref, bv_ref,
                    kp_ref, vp_ref, *, compute_dtype):
    def proj(x_ref, w_ref, b_ref, o_ref):
        acc = jnp.dot(x_ref[...].astype(compute_dtype), w_ref[...],
                      preferred_element_type=jnp.float32)
        o_ref[...] = (acc + b_ref[...]).astype(o_ref.dtype)

    proj(xk_ref, wk_ref, bk_ref, kp_ref)
    proj(xv_ref, wv_ref, bv_ref, vp_ref)


# ---------------------------------------------------------------------------
# Kernel 2: fused Q projection + attention + output projection for one
# (batch, query-tile) grid cell.
# ---------------------------------------------------------------------------
def _attention_kernel(q_ref, kp_ref, vp_ref, bias_ref, wq_ref, bq_ref,
                      wo_ref, bo_ref, out_ref, attn_ref, *, compute_dtype):
    # Fused Q projection; 1/sqrt(d_k) is already folded into wq/bq.
    qp = jnp.dot(q_ref[0].astype(compute_dtype), wq_ref[...],
                 preferred_element_type=jnp.float32) + bq_ref[...]   # (TQ, Dp) f32
    kp = kp_ref[0]                     # (Sp, Dp) compute_dtype
    vp = vp_ref[0]                     # (Sp, Dp) compute_dtype
    bias = bias_ref[0]                 # (1, Sp)  additive mask bias (0 / -1e9)

    # scores = qp @ kp^T, contracting the last dims directly (no kp^T copy).
    # TODO(synk): confirm via pl.lower_as_mlir that this does not lower to an
    # XLU transpose of the (Sp, Dp) K block; if it does, emit K^T from kernel 1.
    scores = lax.dot_general(
        qp.astype(compute_dtype), kp,
        dimension_numbers=(((1,), (1,)), ((), ())),
        preferred_element_type=jnp.float32) + bias                   # (TQ, Sp) f32

    # Numerically stable softmax, kept in f32 (v5e has no bf16 VPU/EUP).
    row_max = jnp.max(scores, axis=-1, keepdims=True)
    exps = jnp.exp(scores - row_max)
    denom = jnp.sum(exps, axis=-1, keepdims=True)                    # >= 1
    inv = pl.reciprocal(denom, approx=True)                          # EUP slot (cheap)
    inv = inv * (2.0 - denom * inv)                                  # Newton -> f32 exact
    probs = exps * inv                                               # (TQ, Sp)

    ctx = jnp.dot(probs.astype(compute_dtype), vp,
                  preferred_element_type=jnp.float32)                # (TQ, Dp)
    out = jnp.dot(ctx.astype(compute_dtype), wo_ref[...],
                  preferred_element_type=jnp.float32) + bo_ref[...]

    out_ref[0] = out.astype(out_ref.dtype)
    attn_ref[0] = probs.astype(attn_ref.dtype)


# ---------------------------------------------------------------------------
# Wrapper
# ---------------------------------------------------------------------------
def attention_pallas(q, k, v, mask, params, *, compute_dtype=jnp.bfloat16):
    """params: wq, bq, wk, bk, wv, bv, wo, bo with PyTorch nn.Linear layout
    (weights are (out, in), biases (D,)).  Returns (output, attention_probs)."""
    B, S, D = q.shape
    scale = 1.0 / math.sqrt(D)                 # module uses d_k = d_model
    f32 = jnp.float32
    csize = jnp.dtype(compute_dtype).itemsize

    # ---- generation-aware VMEM budget with headroom ----
    vmem_cap = 64 * 2**20                      # conservative fallback (v7x per-TC)
    try:
        info = pltpu.get_tpu_info()
        vmem_cap = int(getattr(info, "vmem_capacity_bytes", vmem_cap) or vmem_cap)
    except Exception:
        pass
    budget = int(vmem_cap * 0.8)               # leave compiler-scratch / DMA headroom

    # ---- padded shapes: only pad what the layout actually needs ----
    Dp = _round_up(max(D, 128), 128)           # lane-dense feature dim
    if S <= 256:
        Sp = _round_up(S, 8)                   # do NOT inflate the O(S^2) attn output
        TQ = Sp
    else:
        TQ = 256                               # fills the 256x256 MXU on v6e/v7x
        Sp = _round_up(S, TQ)

    def _attn_vmem(tq, sp):
        kv = 2 * 2 * sp * Dp * csize                           # K,V (double-buffered)
        io = 2 * (tq * Dp * 4 + tq * Dp * 4 + tq * sp * 4)     # q in, out, attn blocks
        wb = 2 * (2 * Dp * Dp * csize + 2 * Dp * 4 + sp * 4)   # wq/wo/bq/bo/bias
        tmp = 4 * tq * sp * 4 + 3 * tq * Dp * 4                # scores/exps/probs/ctx
        return kv + io + wb + tmp

    if S > 256 and _attn_vmem(TQ, Sp) > budget:
        TQ = 128
        Sp = _round_up(S, TQ)
        # TODO(synk): for very long S on v7x (64 MiB VMEM) add an inner K-tile
        # loop accumulating score columns into a (TQ, Sp) scratch instead of
        # keeping the full-Sp K/V blocks resident.
    nq = Sp // TQ

    # ---- zero-pad inputs / weights (semantic no-op; skipped when aligned) ----
    def pad3(x):
        x = x.astype(f32)
        if Sp == S and Dp == D:
            return x
        return jnp.pad(x, ((0, 0), (0, Sp - S), (0, Dp - D)))

    q_p, k_p, v_p = pad3(q), pad3(k), pad3(v)

    # additive mask bias: 0 = keep, -1e9 = masked; padded key positions masked.
    # (handles bool / non-{0,1} masks via `!= 0`)
    bias = jnp.where(mask != 0, 0.0, -1e9).astype(f32)
    if Sp != S:
        bias = jnp.pad(bias, ((0, 0), (0, Sp - S)), constant_values=-1e9)
    bias = bias.reshape(B, 1, Sp)

    def pad_w(w):   # (out, in) -> transposed (in, out), zero padded to (Dp, Dp)
        w = w.T.astype(f32)
        if Dp != D:
            w = jnp.pad(w, ((0, Dp - D), (0, Dp - D)))
        return w

    def pad_b(b):
        b = b.astype(f32)
        if Dp != D:
            b = jnp.pad(b, (0, Dp - D))
        return b.reshape(1, Dp)

    # fold 1/sqrt(d_k) into the Q projection (scales S*D work, not S*S);
    # MXU operands pre-cast to compute_dtype, biases stay f32 (f32 accumulate).
    wq_t = (pad_w(params["wq"]) * scale).astype(compute_dtype)
    bq = pad_b(params["bq"]) * scale
    wk_t = pad_w(params["wk"]).astype(compute_dtype)
    bk = pad_b(params["bk"])
    wv_t = pad_w(params["wv"]).astype(compute_dtype)
    bv = pad_b(params["bv"])
    wo_t = pad_w(params["wo"]).astype(compute_dtype)
    bo = pad_b(params["bo"])

    # ---------------- 1) fused K/V projection over flattened rows ----------------
    rows = B * Sp

    def _proj_vmem(tr):
        io = 2 * 2 * (tr * Dp * 4 + tr * Dp * csize)           # x in + kp/vp out
        wb = 2 * 2 * (Dp * Dp * csize + Dp * 4)
        tmp = 4 * tr * Dp * 4
        return io + wb + tmp

    TR = 8
    for cand in (1024, 512, 256, 128, 64, 32, 16, 8):          # big row tiles help v5e most
        if rows % cand == 0 and _proj_vmem(cand) <= budget:
            TR = cand
            break
    nr = rows // TR

    vmem_limit = int(min(budget,
                         max(2 * max(_proj_vmem(TR), _attn_vmem(TQ, Sp)), 32 * 2**20)))

    xk = k_p.reshape(rows, Dp)
    xv = v_p.reshape(rows, Dp)

    row_spec = pl.BlockSpec((TR, Dp), lambda r: (r, 0))
    # NOTE: weight/bias index maps are constant across the grid, so Pallas only
    # DMAs them once.  TODO(synk): pipeline_mode=pl.Buffered(1) on these would
    # also drop the second buffer allocation (mainly relevant on v7x).
    w_spec = pl.BlockSpec((Dp, Dp), lambda r: (0, 0))
    b_spec = pl.BlockSpec((1, Dp), lambda r: (0, 0))

    kp, vp = pl.pallas_call(
        partial(_kv_proj_kernel, compute_dtype=compute_dtype),
        grid=(nr,),
        in_specs=[row_spec, row_spec, w_spec, w_spec, b_spec, b_spec],
        out_specs=[row_spec, row_spec],
        out_shape=(jax.ShapeDtypeStruct((rows, Dp), compute_dtype),) * 2,
        compiler_params=pltpu.CompilerParams(
            dimension_semantics=("parallel",),
            vmem_limit_bytes=vmem_limit),
    )(xk, xv, wk_t, wv_t, bk, bv)

    kp = kp.reshape(B, Sp, Dp)
    vp = vp.reshape(B, Sp, Dp)

    # ---------------- 2) fused Q-proj + attention + output projection ----------------
    # grid = (B, nq): the inner query-tile axis keeps K/V DMAs to once per batch.
    q_spec = pl.BlockSpec((1, TQ, Dp), lambda b, i: (b, i, 0))
    kv_spec = pl.BlockSpec((1, Sp, Dp), lambda b, i: (b, 0, 0))
    bias_spec = pl.BlockSpec((1, 1, Sp), lambda b, i: (b, 0, 0))
    wqo_spec = pl.BlockSpec((Dp, Dp), lambda b, i: (0, 0))
    bqo_spec = pl.BlockSpec((1, Dp), lambda b, i: (0, 0))

    out_p, attn_p = pl.pallas_call(
        partial(_attention_kernel, compute_dtype=compute_dtype),
        grid=(B, nq),
        in_specs=[q_spec, kv_spec, kv_spec, bias_spec,
                  wqo_spec, bqo_spec, wqo_spec, bqo_spec],
        out_specs=[
            pl.BlockSpec((1, TQ, Dp), lambda b, i: (b, i, 0)),
            pl.BlockSpec((1, TQ, Sp), lambda b, i: (b, i, 0)),
        ],
        out_shape=(
            jax.ShapeDtypeStruct((B, Sp, Dp), f32),
            jax.ShapeDtypeStruct((B, Sp, Sp), f32),
        ),
        compiler_params=pltpu.CompilerParams(
            dimension_semantics=("parallel", "parallel"),
            vmem_limit_bytes=vmem_limit),
    )(q_p, kp, vp, bias, wq_t, bq, wo_t, bo)

    # slice the zero padding back off (skipped entirely when no padding was added)
    out = out_p if (Sp == S and Dp == D) else out_p[:, :S, :D]
    attn = attn_p if Sp == S else attn_p[:, :S, :S]
    return out, attn


# ---------------------------------------------------------------------------
# Pure-JAX reference mirroring the PyTorch forward
# ---------------------------------------------------------------------------
def _attention_ref(q, k, v, mask, params):
    D = q.shape[-1]
    hp = lax.Precision.HIGHEST
    qp = jnp.dot(q, params["wq"].T, precision=hp) + params["bq"]
    kp = jnp.dot(k, params["wk"].T, precision=hp) + params["bk"]
    vp = jnp.dot(v, params["wv"].T, precision=hp) + params["bv"]
    weights = jnp.einsum("bqd,bkd->bqk", qp, kp, precision=hp) / math.sqrt(D)
    weights = jnp.where(mask[:, None, :] == 0, -1e9, weights)
    probs = jax.nn.softmax(weights, axis=-1)
    out = jnp.einsum("bqk,bkd->bqd", probs, vp, precision=hp)
    out = jnp.dot(out, params["wo"].T, precision=hp) + params["bo"]
    return out, probs


if __name__ == "__main__":
    B, S, D = 2, 8, 32  # small d_model instead of the module default 300

    key = jax.random.PRNGKey(0)
    keys = jax.random.split(key, 12)

    bound = 1.0 / math.sqrt(D)  # mimic nn.Linear default init range
    params = {
        "wq": jax.random.uniform(keys[0], (D, D), jnp.float32, -bound, bound),
        "bq": jax.random.uniform(keys[1], (D,), jnp.float32, -bound, bound),
        "wk": jax.random.uniform(keys[2], (D, D), jnp.float32, -bound, bound),
        "bk": jax.random.uniform(keys[3], (D,), jnp.float32, -bound, bound),
        "wv": jax.random.uniform(keys[4], (D, D), jnp.float32, -bound, bound),
        "bv": jax.random.uniform(keys[5], (D,), jnp.float32, -bound, bound),
        "wo": jax.random.uniform(keys[6], (D, D), jnp.float32, -bound, bound),
        "bo": jax.random.uniform(keys[7], (D,), jnp.float32, -bound, bound),
    }

    q = jax.random.normal(keys[8], (B, S, D), jnp.float32)
    k = jax.random.normal(keys[9], (B, S, D), jnp.float32)
    v = jax.random.normal(keys[10], (B, S, D), jnp.float32)
    # mask: 1 = keep, 0 = masked out (last two key positions of batch 1 masked)
    mask = jnp.ones((B, S), jnp.float32).at[1, -2:].set(0.0)

    out_gold, attn_gold = _attention_ref(q, k, v, mask, params)

    # default path: bf16 MXU operands, f32 accumulation (fast path on v6e/v7x).
    out_bf, attn_bf = attention_pallas(q, k, v, mask, params)
    jax.block_until_ready((out_bf, attn_bf))
    assert jnp.allclose(out_bf, out_gold, atol=5e-2), "bf16 output mismatch"
    assert jnp.allclose(attn_bf, attn_gold, atol=5e-2), "bf16 attention mismatch"

    # f32 path: exact semantics, tight tolerances.
    out32, attn32 = attention_pallas(q, k, v, mask, params,
                                     compute_dtype=jnp.float32)
    jax.block_until_ready((out32, attn32))
    assert jnp.allclose(out32, out_gold, atol=1e-4), "f32 output mismatch"
    assert jnp.allclose(attn32, attn_gold, atol=1e-5), "f32 attention mismatch"

    print("KERNEL_OK")
</pallas_src>

<mosaic_0001>
module attributes {stable_mosaic.version = 11 : i64} {
  func.func @_kv_proj_kernel(%arg0: i32, %arg1: memref<16x128xf32, #tpu.memory_space<vmem>>, %arg2: memref<16x128xf32, #tpu.memory_space<vmem>>, %arg3: memref<128x128xbf16, #tpu.memory_space<vmem>>, %arg4: memref<128x128xbf16, #tpu.memory_space<vmem>>, %arg5: memref<1x128xf32, #tpu.memory_space<vmem>>, %arg6: memref<1x128xf32, #tpu.memory_space<vmem>>, %arg7: memref<16x128xbf16, #tpu.memory_space<vmem>>, %arg8: memref<16x128xbf16, #tpu.memory_space<vmem>>) attributes {dimension_semantics = [#tpu.dimension_semantics<parallel>], iteration_bounds = array<i64: 1>, scalar_prefetch = 0 : i64, scratch_operands = 0 : i64, tpu.core_type = #tpu.core_type<tc>, window_params = [{transform_indices = @transform_0, window_bounds = array<i64: 16, 128>}, {transform_indices = @transform_1, window_bounds = array<i64: 16, 128>}, {pipeline_mode = #tpu.pipeline_mode<synchronous>, transform_indices = @transform_2, window_bounds = array<i64: 128, 128>}, {pipeline_mode = #tpu.pipeline_mode<synchronous>, transform_indices = @transform_3, window_bounds = array<i64: 128, 128>}, {pipeline_mode = #tpu.pipeline_mode<synchronous>, transform_indices = @transform_4, window_bounds = array<i64: 1, 128>}, {pipeline_mode = #tpu.pipeline_mode<synchronous>, transform_indices = @transform_5, window_bounds = array<i64: 1, 128>}, {transform_indices = @transform_6, window_bounds = array<i64: 16, 128>}, {transform_indices = @transform_7, window_bounds = array<i64: 16, 128>}]} {
    %c0 = arith.constant 0 : index
    %c0_0 = arith.constant 0 : index
    %0 = vector.load %arg1[%c0, %c0_0] : memref<16x128xf32, #tpu.memory_space<vmem>>, vector<16x128xf32>
    %1 = arith.truncf %0 : vector<16x128xf32> to vector<16x128xbf16>
    %c0_1 = arith.constant 0 : index
    %c0_2 = arith.constant 0 : index
    %2 = vector.load %arg3[%c0_1, %c0_2] : memref<128x128xbf16, #tpu.memory_space<vmem>>, vector<128x128xbf16>
    %cst = arith.constant dense<0.000000e+00> : vector<16x128xf32>
    %3 = tpu.matmul %1, %2, %cst {dimension_numbers = #tpu.dot_dimension_numbers<[1], [0], [0], [1], [0, 0, 1, 1], [], []>} : vector<16x128xbf16>, vector<128x128xbf16>, vector<16x128xf32> -> vector<16x128xf32>
    %c0_3 = arith.constant 0 : index
    %c0_4 = arith.constant 0 : index
    %4 = vector.load %arg5[%c0_3, %c0_4] : memref<1x128xf32, #tpu.memory_space<vmem>>, vector<1x128xf32>
    %5 = vector.broadcast %4 : vector<1x128xf32> to vector<16x128xf32>
    %6 = arith.addf %3, %5 : vector<16x128xf32>
    %7 = arith.truncf %6 : vector<16x128xf32> to vector<16x128xbf16>
    %c0_5 = arith.constant 0 : index
    %c0_6 = arith.constant 0 : index
    %8 = vector.load %arg7[%c0_5, %c0_6] : memref<16x128xbf16, #tpu.memory_space<vmem>>, vector<16x128xbf16>
    tpu.vector_store %arg7[%c0_5, %c0_6], %7 {strides = array<i32>} : memref<16x128xbf16, #tpu.memory_space<vmem>>, vector<16x128xbf16>,
    %c0_7 = arith.constant 0 : index
    %c0_8 = arith.constant 0 : index
    %9 = vector.load %arg2[%c0_7, %c0_8] : memref<16x128xf32, #tpu.memory_space<vmem>>, vector<16x128xf32>
    %10 = arith.truncf %9 : vector<16x128xf32> to vector<16x128xbf16>
    %c0_9 = arith.constant 0 : index
    %c0_10 = arith.constant 0 : index
    %11 = vector.load %arg4[%c0_9, %c0_10] : memref<128x128xbf16, #tpu.memory_space<vmem>>, vector<128x128xbf16>
    %cst_11 = arith.constant dense<0.000000e+00> : vector<16x128xf32>
    %12 = tpu.matmul %10, %11, %cst_11 {dimension_numbers = #tpu.dot_dimension_numbers<[1], [0], [0], [1], [0, 0, 1, 1], [], []>} : vector<16x128xbf16>, vector<128x128xbf16>, vector<16x128xf32> -> vector<16x128xf32>
    %c0_12 = arith.constant 0 : index
    %c0_13 = arith.constant 0 : index
    %13 = vector.load %arg6[%c0_12, %c0_13] : memref<1x128xf32, #tpu.memory_space<vmem>>, vector<1x128xf32>
    %14 = vector.broadcast %13 : vector<1x128xf32> to vector<16x128xf32>
    %15 = arith.addf %12, %14 : vector<16x128xf32>
    %16 = arith.truncf %15 : vector<16x128xf32> to vector<16x128xbf16>
    %c0_14 = arith.constant 0 : index
    %c0_15 = arith.constant 0 : index
    %17 = vector.load %arg8[%c0_14, %c0_15] : memref<16x128xbf16, #tpu.memory_space<vmem>>, vector<16x128xbf16>
    tpu.vector_store %arg8[%c0_14, %c0_15], %16 {strides = array<i32>} : memref<16x128xbf16, #tpu.memory_space<vmem>>, vector<16x128xbf16>,
    return
  }
  func.func @transform_0(%arg0: i32) -> (i32, i32) {
    %c0_i32 = arith.constant 0 : i32
    %c0_i32_0 = arith.constant 0 : i32
    return %arg0, %c0_i32 : i32, i32
  }
  func.func @transform_1(%arg0: i32) -> (i32, i32) {
    %c0_i32 = arith.constant 0 : i32
    %c0_i32_0 = arith.constant 0 : i32
    return %arg0, %c0_i32 : i32, i32
  }
  func.func @transform_2(%arg0: i32) -> (i32, i32) {
    %c0_i32 = arith.constant 0 : i32
    %c0_i32_0 = arith.constant 0 : i32
    %c0_i32_1 = arith.constant 0 : i32
    return %c0_i32, %c0_i32_0 : i32, i32
  }
  func.func @transform_3(%arg0: i32) -> (i32, i32) {
    %c0_i32 = arith.constant 0 : i32
    %c0_i32_0 = arith.constant 0 : i32
    %c0_i32_1 = arith.constant 0 : i32
    return %c0_i32, %c0_i32_0 : i32, i32
  }
  func.func @transform_4(%arg0: i32) -> (i32, i32) {
    %c0_i32 = arith.constant 0 : i32
    %c0_i32_0 = arith.constant 0 : i32
    %c0_i32_1 = arith.constant 0 : i32
    return %c0_i32, %c0_i32_0 : i32, i32
  }
  func.func @transform_5(%arg0: i32) -> (i32, i32) {
    %c0_i32 = arith.constant 0 : i32
    %c0_i32_0 = arith.constant 0 : i32
    %c0_i32_1 = arith.constant 0 : i32
    return %c0_i32, %c0_i32_0 : i32, i32
  }
  func.func @transform_6(%arg0: i32) -> (i32, i32) {
    %c0_i32 = arith.constant 0 : i32
    %c0_i32_0 = arith.constant 0 : i32
    return %arg0, %c0_i32 : i32, i32
  }
  func.func @transform_7(%arg0: i32) -> (i32, i32) {
    %c0_i32 = arith.constant 0 : i32
    %c0_i32_0 = arith.constant 0 : i32
    return %arg0, %c0_i32 : i32, i32
  }
}

</mosaic_0001>

<llo_original>
// kernel: tpu_custom_call.1
$region0: #{tpu_custom_call.1}
  #allocation0 [shape = 'u32[]', space=smem, size = 0x4, offset = 0x4, fixed_abs, tag = 'smem constant byte address 0x4 - core index']
  #allocation1 [shape = 'u32[144,128]{1,0:T(1,128)}', space=vmem, size = 0x12000, scoped, tag = 'internal scratch']
  %s0 = inlined_call_operand.hbm [shape: f32[16,128], index: 0, kind: input, shape index: {}]
  %s1 = inlined_call_operand.hbm [shape: f32[16,128], index: 1, kind: input, shape index: {}]
  %s2 = inlined_call_operand.hbm [shape: bf16[128,128], index: 2, kind: input, shape index: {}]
  %s3 = inlined_call_operand.hbm [shape: bf16[128,128], index: 3, kind: input, shape index: {}]
  %s4 = inlined_call_operand.vmem [shape: f32[1,128], index: 4, kind: input, shape index: {}]
  %s5 = inlined_call_operand.vmem [shape: f32[1,128], index: 5, kind: input, shape index: {}]
  %s6 = inlined_call_operand.hbm [shape: bf16[16,128], index: 6, kind: output, shape index: {0}]
  %s7 = inlined_call_operand.hbm [shape: bf16[16,128], index: 7, kind: output, shape index: {1}]
  %8 = xla_tuple %s6, %s7
  %s9 = sld [smem:[#allocation0]]
  $region58: #{tpu_custom_call.1} parent=0
    _
  %s11 = ssub.s32 1, %s9
  %s12 = scalar_select 0, %s11, %s9
  $region1: #{tpu_custom_call.1} parent=0
    #allocation2 [shape = 'u8[8192]{0}', space=vmem, size = 0x2000, scoped, tag = 'input window, operand 0, single buffered']
    #allocation3 [shape = 's32[1]{0}', space=sflag, size = 0x4, scoped, tag = 'scoped memory for tpu_custom_call.1']
    #allocation4 [shape = 's32[1]{0}', space=sflag, size = 0x4, scoped, tag = 'scoped memory for tpu_custom_call.1']
    #allocation5 [shape = 'u8[8192]{0}', space=vmem, size = 0x2000, scoped, tag = 'input window, operand 1, single buffered']
    #allocation6 [shape = 's32[1]{0}', space=sflag, size = 0x4, scoped, tag = 'scoped memory for tpu_custom_call.1']
    #allocation7 [shape = 'u8[32768]{0}', space=vmem, size = 0x8000, scoped, tag = 'input window, operand 2, single buffered']
    #allocation8 [shape = 'u8[32768]{0}', space=vmem, size = 0x8000, scoped, tag = 'input window, operand 3, single buffered']
    #allocation9 [shape = 's32[1]{0}', space=sflag, size = 0x4, scoped, tag = 'scoped memory for tpu_custom_call.1']
    #allocation10 [shape = 'u8[4096]{0}', space=vmem, size = 0x1000, scoped, tag = 'output window, operand 0, single buffered']
    #allocation11 [shape = 'u8[4096]{0}', space=vmem, size = 0x1000, scoped, tag = 'output window, operand 1, single buffered']
    #allocation12 [shape = 's32[1]{0}', space=sflag, size = 0x4, scoped, tag = 'scoped memory for tpu_custom_call.1']
    %13 = vsyncpa [#allocation3], 0
    %14 = vsyncpa [#allocation6], 0
    %15 = vsyncpa [#allocation9], 0
    %16 = vsyncpa [#allocation4], 0
    %17 = vsyncpa [#allocation12], 0
    // Predicated region
    $region2: #{tpu_custom_call.1} parent=1 // pred_check
      _
    $region3: #{tpu_custom_call.1} parent=1 // pred_check_branch
      %19 = sbr.rel (0) target = $region5
    $region4: #{tpu_custom_call.1} parent=1 // pred_region
      %s21 = ssub.s32 256, 256
      %22 = vsyncadd [#allocation3], %s21
      %s23 = sshll.u32 [#allocation2], 4
      %s24 = int_to_ptr.vmem [resolvable:$true] %s23
      %29 = dma.hbm_to_vmem [thread:$0]  %s0, 256, %s24, [#allocation3], 128, 128, 8
    $region5: #{tpu_custom_call.1} parent=1 // pred_fallthru
      _
    // Predicated region
    $region6: #{tpu_custom_call.1} parent=1 // pred_check
      _
    $region7: #{tpu_custom_call.1} parent=1 // pred_check_branch
      %31 = sbr.rel (0) target = $region9
    $region8: #{tpu_custom_call.1} parent=1 // pred_region
      %s33 = ssub.s32 256, 256
      %34 = vsyncadd [#allocation6], %s33
      %s35 = sshll.u32 [#allocation5], 4
      %s36 = int_to_ptr.vmem [resolvable:$true] %s35
      %41 = dma.hbm_to_vmem [thread:$0]  %s1, 256, %s36, [#allocation6], 128, 128, 8
    $region9: #{tpu_custom_call.1} parent=1 // pred_fallthru
      _
    // Predicated region
    $region10: #{tpu_custom_call.1} parent=1 // pred_check
      _
    $region11: #{tpu_custom_call.1} parent=1 // pred_check_branch
      %43 = sbr.rel (0) target = $region13
    $region12: #{tpu_custom_call.1} parent=1 // pred_region
      %s45 = ssub.s32 1024, 1024
      %46 = vsyncadd [#allocation6], %s45
      %s47 = sshll.u32 [#allocation7], 4
      %s48 = int_to_ptr.vmem [resolvable:$true] %s47
      %53 = dma.hbm_to_vmem [thread:$0]  %s2, 1024, %s48, [#allocation6], 64, 64, 4
    $region13: #{tpu_custom_call.1} parent=1 // pred_fallthru
      _
    // Predicated region
    $region14: #{tpu_custom_call.1} parent=1 // pred_check
      _
    $region15: #{tpu_custom_call.1} parent=1 // pred_check_branch
      %55 = sbr.rel (0) target = $region17
    $region16: #{tpu_custom_call.1} parent=1 // pred_region
      %s57 = ssub.s32 1024, 1024
      %58 = vsyncadd [#allocation9], %s57
      %s59 = sshll.u32 [#allocation8], 4
      %s60 = int_to_ptr.vmem [resolvable:$true] %s59
      %65 = dma.hbm_to_vmem [thread:$0]  %s3, 1024, %s60, [#allocation9], 64, 64, 4
    $region17: #{tpu_custom_call.1} parent=1 // pred_fallthru
      _
    // Predicated region
    $region18: #{tpu_custom_call.1} parent=1 // pred_check
      _
    $region19: #{tpu_custom_call.1} parent=1 // pred_check_branch
      %67 = sbr.rel (0) target = $region21
    $region20: #{tpu_custom_call.1} parent=1 // pred_region
      _
    $region21: #{tpu_custom_call.1} parent=1 // pred_fallthru
      _
    // Predicated region
    $region22: #{tpu_custom_call.1} parent=1 // pred_check
      _
    $region23: #{tpu_custom_call.1} parent=1 // pred_check_branch
      %69 = sbr.rel (0) target = $region25
    $region24: #{tpu_custom_call.1} parent=1 // pred_region
      _
    $region25: #{tpu_custom_call.1} parent=1 // pred_fallthru
      _
    // Predicated region
    $region26: #{tpu_custom_call.1} parent=1 // pred_check
      _
    $region27: #{tpu_custom_call.1} parent=1 // pred_check_branch
      %71 = sbr.rel (0) target = $region29
    $region28: #{tpu_custom_call.1} parent=1 // pred_region
      %72 = dma.done [#allocation3], 256
    $region29: #{tpu_custom_call.1} parent=1 // pred_fallthru
      _
    // Predicated region
    $region30: #{tpu_custom_call.1} parent=1 // pred_check
      _
    $region31: #{tpu_custom_call.1} parent=1 // pred_check_branch
      %74 = sbr.rel (0) target = $region33
    $region32: #{tpu_custom_call.1} parent=1 // pred_region
      %75 = dma.done [#allocation6], 256
    $region33: #{tpu_custom_call.1} parent=1 // pred_fallthru
      _
    // Predicated region
    $region34: #{tpu_custom_call.1} parent=1 // pred_check
      _
    $region35: #{tpu_custom_call.1} parent=1 // pred_check_branch
      %77 = sbr.rel (0) target = $region37
    $region36: #{tpu_custom_call.1} parent=1 // pred_region
      %78 = dma.done [#allocation6], 1024
    $region37: #{tpu_custom_call.1} parent=1 // pred_fallthru
      _
    // Predicated region
    $region38: #{tpu_custom_call.1} parent=1 // pred_check
      _
    $region39: #{tpu_custom_call.1} parent=1 // pred_check_branch
      %80 = sbr.rel (0) target = $region41
    $region40: #{tpu_custom_call.1} parent=1 // pred_region
      %81 = dma.done [#allocation9], 1024
    $region41: #{tpu_custom_call.1} parent=1 // pred_fallthru
      _
    %v83 = vld [vmem:[#allocation2] sm:$0xff]
    %v84 = vld [vmem:[#allocation2 + $0x8] sm:$0xff]
    %v85 = vpack.c.bf16 %v84, %v83
    %v86 = vld [vmem:[#allocation7] sm:$0xf]
    %v87 = vld [vmem:[#allocation7 + $0x4] sm:$0xf]
    %v88 = vld [vmem:[#allocation7 + $0x8] sm:$0xf]
    %v89 = vld [vmem:[#allocation7 + $0xc] sm:$0xf]
    %v90 = vld [vmem:[#allocation7 + $0x10] sm:$0xf]
    %v91 = vld [vmem:[#allocation7 + $0x14] sm:$0xf]
    %v92 = vld [vmem:[#allocation7 + $0x18] sm:$0xf]
    %v93 = vld [vmem:[#allocation7 + $0x1c] sm:$0xf]
    %v94 = vld [vmem:[#allocation7 + $0x20] sm:$0xf]
    %v95 = vld [vmem:[#allocation7 + $0x24] sm:$0xf]
    %v96 = vld [vmem:[#allocation7 + $0x28] sm:$0xf]
    %v97 = vld [vmem:[#allocation7 + $0x2c] sm:$0xf]
    %v98 = vld [vmem:[#allocation7 + $0x30] sm:$0xf]
    %v99 = vld [vmem:[#allocation7 + $0x34] sm:$0xf]
    %v100 = vld [vmem:[#allocation7 + $0x38] sm:$0xf]
    %v101 = vld [vmem:[#allocation7 + $0x3c] sm:$0xf]
    %v102 = vld [vmem:[%s4] sm:$0x1]
    %v104 = vlaneseq
    %v105 = vshrl.u32 %v104, 7
    %v106 = vsub.s32 0, %v105
    %v107 = vrot.slane %v102, %v106
    %v125 = vunpack.c.l.b16 %v86
    %v126 = vunpack.c.l.b16 %v87
    %v127 = vunpack.c.l.b16 %v88
    %v128 = vunpack.c.l.b16 %v89
    %v129 = vunpack.c.l.b16 %v90
    %v130 = vunpack.c.l.b16 %v91
    %v131 = vunpack.c.l.b16 %v92
    %v132 = vunpack.c.l.b16 %v93
    %v133 = vunpack.c.l.b16 %v94
    %v134 = vunpack.c.l.b16 %v95
    %v135 = vunpack.c.l.b16 %v96
    %v136 = vunpack.c.l.b16 %v97
    %v137 = vunpack.c.l.b16 %v98
    %v138 = vunpack.c.l.b16 %v99
    %v139 = vunpack.c.l.b16 %v100
    %v140 = vunpack.c.l.b16 %v101
    %v141 = vpack.c.b16 %v126, %v125
    %v142 = vpack.c.b16 %v128, %v127
    %v143 = vpack.c.b16 %v130, %v129
    %v144 = vpack.c.b16 %v132, %v131
    %v145 = vpack.c.b16 %v134, %v133
    %v146 = vpack.c.b16 %v136, %v135
    %v147 = vpack.c.b16 %v138, %v137
    %v148 = vpack.c.b16 %v140, %v139
    %157 = vmatprep.subr.bf16.mxu0 0
    %158 = vmatpush1.bf16.msra.mxu0 %v141
    %159 = vmatprep.subr.bf16.mxu0 0
    %160 = vmatpush1.bf16.msra.mxu0 %v142
    %161 = vmatprep.subr.bf16.mxu0 0
    %162 = vmatpush1.bf16.msra.mxu0 %v143
    %163 = vmatprep.subr.bf16.mxu0 0
    %164 = vmatpush1.bf16.msra.mxu0 %v144
    %165 = vmatprep.subr.bf16.mxu0 0
    %166 = vmatpush1.bf16.msra.mxu0 %v145
    %167 = vmatprep.subr.bf16.mxu0 0
    %168 = vmatpush1.bf16.msra.mxu0 %v146
    %169 = vmatprep.subr.bf16.mxu0 0
    %170 = vmatpush1.bf16.msra.mxu0 %v147
    %171 = vmatprep.subr.bf16.mxu0 0
    %172 = vmatpush1.bf16.msra.mxu0 %v148
    %173 = vmatprep.subr.bf16.mxu0 0
    %174 = vmatpush1.bf16.msra.mxu0 0
    %175 = vmatprep.subr.bf16.mxu0 0
    %176 = vmatpush1.bf16.msra.mxu0 0
    %177 = vmatprep.subr.bf16.mxu0 0
    %178 = vmatpush1.bf16.msra.mxu0 0
    %179 = vmatprep.subr.bf16.mxu0 0
    %180 = vmatpush1.bf16.msra.mxu0 0
    %181 = vmatprep.subr.bf16.mxu0 0
    %182 = vmatpush1.bf16.msra.mxu0 0
    %183 = vmatprep.subr.bf16.mxu0 0
    %184 = vmatpush1.bf16.msra.mxu0 0
    %185 = vmatprep.subr.bf16.mxu0 0
    %186 = vmatpush1.bf16.msra.mxu0 0
    %187 = vmatprep.subr.bf16.mxu0 0
    %188 = vmatpush1.bf16.msra.mxu0 0
    %189 = vmatprep.mubr.bf16.mxu0 0
    %190 = vmatmul.mubr.bf16.gmra.mrb[0].mxu0 %v85
    %v191 = vpop.f32.mrb[0].mxu0
    %v192 = vadd.f32 %v107, %v191
    %v193 = vpop.f32.mrb[0].mxu0
    %v194 = vpop.f32.mrb[0].mxu0
    %v195 = vadd.f32 %v107, %v194
    %v196 = vpop.f32.mrb[0].mxu0
    %197 = vdwg.mxu0
    %v198 = vpack.c.bf16 %v195, %v192
    %v200 = vunpack.c.l.b16 %v198
    %v201 = vunpack.c.h.b16 %v198
    %v202 = vpack.c.b16 %v200, %v200
    %v203 = vpack.c.b16 %v201, %v201
    %206 = vst [vmem:[#allocation10] sm:$0xf] %v202
    %207 = vst [vmem:[#allocation10 + $0x4] sm:$0xf] %v203
    %v208 = vld [vmem:[#allocation5] sm:$0xff]
    %v209 = vld [vmem:[#allocation5 + $0x8] sm:$0xff]
    %v210 = vpack.c.bf16 %v209, %v208
    %v211 = vld [vmem:[#allocation8] sm:$0xf]
    %v212 = vld [vmem:[#allocation8 + $0x4] sm:$0xf]
    %v213 = vld [vmem:[#allocation8 + $0x8] sm:$0xf]
    %v214 = vld [vmem:[#allocation8 + $0xc] sm:$0xf]
    %v215 = vld [vmem:[#allocation8 + $0x10] sm:$0xf]
    %v216 = vld [vmem:[#allocation8 + $0x14] sm:$0xf]
    %v217 = vld [vmem:[#allocation8 + $0x18] sm:$0xf]
    %v218 = vld [vmem:[#allocation8 + $0x1c] sm:$0xf]
    %v219 = vld [vmem:[#allocation8 + $0x20] sm:$0xf]
    %v220 = vld [vmem:[#allocation8 + $0x24] sm:$0xf]
    %v221 = vld [vmem:[#allocation8 + $0x28] sm:$0xf]
    %v222 = vld [vmem:[#allocation8 + $0x2c] sm:$0xf]
    %v223 = vld [vmem:[#allocation8 + $0x30] sm:$0xf]
    %v224 = vld [vmem:[#allocation8 + $0x34] sm:$0xf]
    %v225 = vld [vmem:[#allocation8 + $0x38] sm:$0xf]
    %v226 = vld [vmem:[#allocation8 + $0x3c] sm:$0xf]
    %v227 = vld [vmem:[%s5] sm:$0x1]
    %v229 = vlaneseq
    %v230 = vshrl.u32 %v229, 7
    %v231 = vsub.s32 0, %v230
    %v232 = vrot.slane %v227, %v231
    %v250 = vunpack.c.l.b16 %v211
    %v251 = vunpack.c.l.b16 %v212
    %v252 = vunpack.c.l.b16 %v213
    %v253 = vunpack.c.l.b16 %v214
    %v254 = vunpack.c.l.b16 %v215
    %v255 = vunpack.c.l.b16 %v216
    %v256 = vunpack.c.l.b16 %v217
    %v257 = vunpack.c.l.b16 %v218
    %v258 = vunpack.c.l.b16 %v219
    %v259 = vunpack.c.l.b16 %v220
    %v260 = vunpack.c.l.b16 %v221
    %v261 = vunpack.c.l.b16 %v222
    %v262 = vunpack.c.l.b16 %v223
    %v263 = vunpack.c.l.b16 %v224
    %v264 = vunpack.c.l.b16 %v225
    %v265 = vunpack.c.l.b16 %v226
    %v266 = vpack.c.b16 %v251, %v250
    %v267 = vpack.c.b16 %v253, %v252
    %v268 = vpack.c.b16 %v255, %v254
    %v269 = vpack.c.b16 %v257, %v256
    %v270 = vpack.c.b16 %v259, %v258
    %v271 = vpack.c.b16 %v261, %v260
    %v272 = vpack.c.b16 %v263, %v262
    %v273 = vpack.c.b16 %v265, %v264
    %282 = vmatprep.subr.bf16.mxu0 0
    %283 = vmatpush1.bf16.msra.mxu0 %v266
    %284 = vmatprep.subr.bf16.mxu0 0
    %285 = vmatpush1.bf16.msra.mxu0 %v267
    %286 = vmatprep.subr.bf16.mxu0 0
    %287 = vmatpush1.bf16.msra.mxu0 %v268
    %288 = vmatprep.subr.bf16.mxu0 0
    %289 = vmatpush1.bf16.msra.mxu0 %v269
    %290 = vmatprep.subr.bf16.mxu0 0
    %291 = vmatpush1.bf16.msra.mxu0 %v270
    %292 = vmatprep.subr.bf16.mxu0 0
    %293 = vmatpush1.bf16.msra.mxu0 %v271
    %294 = vmatprep.subr.bf16.mxu0 0
    %295 = vmatpush1.bf16.msra.mxu0 %v272
    %296 = vmatprep.subr.bf16.mxu0 0
    %297 = vmatpush1.bf16.msra.mxu0 %v273
    %298 = vmatprep.subr.bf16.mxu0 0
    %299 = vmatpush1.bf16.msra.mxu0 0
    %300 = vmatprep.subr.bf16.mxu0 0
    %301 = vmatpush1.bf16.msra.mxu0 0
    %302 = vmatprep.subr.bf16.mxu0 0
    %303 = vmatpush1.bf16.msra.mxu0 0
    %304 = vmatprep.subr.bf16.mxu0 0
    %305 = vmatpush1.bf16.msra.mxu0 0
    %306 = vmatprep.subr.bf16.mxu0 0
    %307 = vmatpush1.bf16.msra.mxu0 0
    %308 = vmatprep.subr.bf16.mxu0 0
    %309 = vmatpush1.bf16.msra.mxu0 0
    %310 = vmatprep.subr.bf16.mxu0 0
    %311 = vmatpush1.bf16.msra.mxu0 0
    %312 = vmatprep.subr.bf16.mxu0 0
    %313 = vmatpush1.bf16.msra.mxu0 0
    %314 = vmatprep.mubr.bf16.mxu0 0
    %315 = vmatmul.mubr.bf16.gmra.mrb[0].mxu0 %v210
    %v316 = vpop.f32.mrb[0].mxu0
    %v317 = vadd.f32 %v232, %v316
    %v318 = vpop.f32.mrb[0].mxu0
    %v319 = vpop.f32.mrb[0].mxu0
    %v320 = vadd.f32 %v232, %v319
    %v321 = vpop.f32.mrb[0].mxu0
    %322 = vdwg.mxu0
    %v323 = vpack.c.bf16 %v320, %v317
    %v325 = vunpack.c.l.b16 %v323
    %v326 = vunpack.c.h.b16 %v323
    %v327 = vpack.c.b16 %v325, %v325
    %v328 = vpack.c.b16 %v326, %v326
    %331 = vst [vmem:[#allocation11] sm:$0xf] %v327
    %332 = vst [vmem:[#allocation11 + $0x4] sm:$0xf] %v328
    // Predicated region
    $region42: #{tpu_custom_call.1} parent=1 // pred_check
      _
    $region43: #{tpu_custom_call.1} parent=1 // pred_check_branch
      %334 = sbr.rel (0) target = $region45
    $region44: #{tpu_custom_call.1} parent=1 // pred_region
      %s336 = ssub.s32 128, 128
      %337 = vsyncadd [#allocation4], %s336
      %s338 = sshll.u32 [#allocation10], 4
      %s339 = int_to_ptr.vmem [resolvable:$true] %s338
      %344 = dma.vmem_to_hbm [thread:$0]  %s339, 128, %s6, [#allocation4], 64, 64, 4
    $region45: #{tpu_custom_call.1} parent=1 // pred_fallthru
      _
    // Predicated region
    $region46: #{tpu_custom_call.1} parent=1 // pred_check
      _
    $region47: #{tpu_custom_call.1} parent=1 // pred_check_branch
      %346 = sbr.rel (0) target = $region49
    $region48: #{tpu_custom_call.1} parent=1 // pred_region
      %s348 = ssub.s32 128, 128
      %349 = vsyncadd [#allocation12], %s348
      %s350 = sshll.u32 [#allocation11], 4
      %s351 = int_to_ptr.vmem [resolvable:$true] %s350
      %356 = dma.vmem_to_hbm [thread:$0]  %s351, 128, %s7, [#allocation12], 64, 64, 4
    $region49: #{tpu_custom_call.1} parent=1 // pred_fallthru
      _
    // Predicated region
    $region50: #{tpu_custom_call.1} parent=1 // pred_check
      _
    $region51: #{tpu_custom_call.1} parent=1 // pred_check_branch
      %358 = sbr.rel (0) target = $region53
    $region52: #{tpu_custom_call.1} parent=1 // pred_region
      %359 = dma.done [#allocation4], 128
    $region53: #{tpu_custom_call.1} parent=1 // pred_fallthru
      _
    // Predicated region
    $region54: #{tpu_custom_call.1} parent=1 // pred_check
      _
    $region55: #{tpu_custom_call.1} parent=1 // pred_check_branch
      %361 = sbr.rel (0) target = $region57
    $region56: #{tpu_custom_call.1} parent=1 // pred_region
      %362 = dma.done [#allocation12], 128
    $region57: #{tpu_custom_call.1} parent=1 // pred_fallthru
      _
    %363 = vsyncpa [#allocation3], 1
    %364 = vsyncpa [#allocation6], 1
    %365 = vsyncpa [#allocation9], 1
    %366 = vsyncpa [#allocation4], 1
    %367 = vsyncpa [#allocation12], 1

</llo_original>
